<compile_context>
chip_gen: v6e
topology: v6e:2x2x1
jax: 0.10.0
libtpu: 0.0.40
codegen_flags: <defaults>
</compile_context>

<pallas_src>
import functools

import jax
import jax.numpy as jnp
from jax.experimental import pallas as pl
from jax.experimental.pallas import tpu as pltpu


def _round_up(n, m):
    return ((n + m - 1) // m) * m


def _pick_tile_b(batch, cap):
    """Pick the batch-tile row count.

    Large (amortizes ~0.35us/step overhead), multiple of 16 when possible
    (bf16 sublane packing), and trailing-tile compute waste kept under ~12.5%.
    """
    cap = max(16, int(cap))
    tile = min(cap, _round_up(batch, 16))
    if tile >= batch:
        # Single tile covers the whole (sublane-rounded) batch.
        return _round_up(batch, 8)
    # Shrink power-of-two tiles while the trailing partial tile wastes > 1/8 of B.
    while tile > 256 and (_round_up(batch, tile) - batch) * 8 > batch:
        tile //= 2
    return tile


def _autoencoder_kernel(x_ref,
                        w1_ref, w2_ref, w3_ref, w4_ref, w5_ref, w6_ref,
                        b_ref, out_ref, emb_ref, *, compute_dtype):
    """One batch tile through all six fused Linear(+ReLU) layers."""
    cdt = compute_dtype
    w_refs = (w1_ref, w2_ref, w3_ref, w4_ref, w5_ref, w6_ref)
    b_all = b_ref[...]  # (8, 128) f32; row i holds bias of layer i (zero padded)

    def dense(h, layer, relu):
        w = w_refs[layer][...]                      # natural (fan_in, fan_out)
        width = w.shape[1]
        # MXU matmul in compute dtype, f32 accumulation.
        y = jnp.dot(h.astype(cdt), w, preferred_element_type=jnp.float32)
        # Bias add + ReLU in f32 on the VPU (v5e has no bf16 VPU).
        y = y + b_all[layer:layer + 1, :width]
        if relu:
            y = jnp.maximum(y, 0.0)
        return y

    # ---- encode: Linear(in,128) -> ReLU -> Linear(128,64) -> ReLU -> Linear(64,enc)
    h = dense(x_ref[...], 0, True)
    h = dense(h, 1, True)
    emb = dense(h, 2, False)
    emb_ref[...] = emb.astype(emb_ref.dtype)

    # ---- decode: Linear(enc,64) -> ReLU -> Linear(64,128) -> ReLU -> Linear(128,in)
    d = dense(emb, 3, True)
    d = dense(d, 4, True)
    out_ref[...] = dense(d, 5, False).astype(out_ref.dtype)


def autoencoder_forward(x, params, *, tile_b=2048, compute_dtype=jnp.bfloat16):
    """x: (B, in_shape) float32. params: dict of transposed (fan_in, fan_out) weights."""
    B, in_shape = x.shape
    enc_shape = params["w3"].shape[1]

    # Natural (unpadded) layer dims: encoder then decoder.
    layer_dims = [(in_shape, 128), (128, 64), (64, enc_shape),
                  (enc_shape, 64), (64, 128), (128, in_shape)]

    tile_b = _pick_tile_b(B, tile_b)
    grid = (pl.cdiv(B, tile_b),)   # trailing partial tile handled by Pallas masking

    itemsize = jnp.dtype(compute_dtype).itemsize

    # Weights at natural shapes, cast once to the MXU compute dtype (resident in VMEM).
    ws = [params[f"w{i + 1}"].astype(compute_dtype) for i in range(6)]

    # Pack the six biases into a single (8, 128) f32 tile (rows 0..5).
    b_pack = jnp.zeros((8, 128), jnp.float32)
    for i in range(6):
        b_i = params[f"b{i + 1}"][0].astype(jnp.float32)
        b_pack = b_pack.at[i, :b_i.shape[0]].set(b_i)

    # x at natural width; weights/biases with constant index_maps stay resident.
    in_specs = [pl.BlockSpec((tile_b, in_shape), lambda i: (i, 0))]
    for (r, c) in layer_dims:
        in_specs.append(pl.BlockSpec((r, c), lambda i: (0, 0)))
    in_specs.append(pl.BlockSpec((8, 128), lambda i: (0, 0)))

    # Outputs at true widths -> lane traffic is only the valid columns.
    out_specs = (pl.BlockSpec((tile_b, in_shape), lambda i: (i, 0)),
                 pl.BlockSpec((tile_b, enc_shape), lambda i: (i, 0)))

    # Scheduler hint (honest, unpadded byte counts).
    flops = 2 * B * sum(r * c for r, c in layer_dims)
    bytes_accessed = (B * in_shape * 4                       # x (f32 in)
                      + sum(w.size * itemsize for w in ws)   # weights
                      + b_pack.size * 4                      # biases
                      + B * in_shape * 4                     # out (f32)
                      + B * enc_shape * 4)                   # emb (f32)

    # VMEM budget: double-buffered x/out/emb tiles + resident weights + headroom
    # for live (tile_b, 128) f32 intermediates; clamp under v7x's 64 MiB VMEM.
    weight_bytes = sum(w.size * itemsize for w in ws) + b_pack.size * 4
    tile_bytes = (2 * tile_b * in_shape * 4      # x tiles (f32)
                  + 2 * tile_b * in_shape * 4    # out tiles (f32)
                  + 2 * tile_b * enc_shape * 4   # emb tiles (f32)
                  + 6 * tile_b * 128 * 4)        # live hidden activations
    vmem_limit = int(min(max(2 * (weight_bytes + tile_bytes), 32 * 1024 * 1024),
                         48 * 1024 * 1024))

    out, emb = pl.pallas_call(
        functools.partial(_autoencoder_kernel, compute_dtype=compute_dtype),
        out_shape=(jax.ShapeDtypeStruct((B, in_shape), jnp.float32),
                   jax.ShapeDtypeStruct((B, enc_shape), jnp.float32)),
        grid=grid,
        in_specs=in_specs,
        out_specs=out_specs,
        compiler_params=pltpu.CompilerParams(
            dimension_semantics=("parallel",),
            vmem_limit_bytes=vmem_limit),
        cost_estimate=pl.CostEstimate(flops=flops, transcendentals=0,
                                      bytes_accessed=bytes_accessed),
    )(x, *ws, b_pack)

    return out, emb


def init_params(key, in_shape, enc_shape):
    """PyTorch-style Linear init, U(-1/sqrt(fan_in), 1/sqrt(fan_in)).

    Weights are stored transposed: (fan_in, fan_out). Biases: (1, fan_out).
    """
    dims = [
        (in_shape, 128), (128, 64), (64, enc_shape),   # encoder
        (enc_shape, 64), (64, 128), (128, in_shape),   # decoder
    ]
    params = {}
    keys = jax.random.split(key, 2 * len(dims))
    for i, (fan_in, fan_out) in enumerate(dims):
        bound = 1.0 / (fan_in ** 0.5)
        params[f"w{i + 1}"] = jax.random.uniform(
            keys[2 * i], (fan_in, fan_out), jnp.float32, -bound, bound)
        params[f"b{i + 1}"] = jax.random.uniform(
            keys[2 * i + 1], (1, fan_out), jnp.float32, -bound, bound)
    return params


def reference_forward(x, params):
    """Plain-JAX f32 reference."""
    h = jnp.maximum(x @ params["w1"] + params["b1"], 0.0)
    h = jnp.maximum(h @ params["w2"] + params["b2"], 0.0)
    emb = h @ params["w3"] + params["b3"]
    d = jnp.maximum(emb @ params["w4"] + params["b4"], 0.0)
    d = jnp.maximum(d @ params["w5"] + params["b5"], 0.0)
    out = d @ params["w6"] + params["b6"]
    return out, emb


if __name__ == "__main__":
    key = jax.random.PRNGKey(0)
    k_x, k_p, k_x2 = jax.random.split(key, 3)

    batch = 8
    in_shape = 32
    enc_shape = 8

    x = jax.random.normal(k_x, (batch, in_shape), jnp.float32)
    params = init_params(k_p, in_shape, enc_shape)
    ref_out, ref_emb = reference_forward(x, params)

    # Exact-math path (f32 matmuls) — tight tolerance sanity check.
    out32, emb32 = autoencoder_forward(x, params, compute_dtype=jnp.float32)
    out32 = jax.block_until_ready(out32)
    emb32 = jax.block_until_ready(emb32)
    assert out32.shape == (batch, in_shape) and emb32.shape == (batch, enc_shape)
    assert jnp.allclose(out32, ref_out, atol=1e-5, rtol=1e-5)
    assert jnp.allclose(emb32, ref_emb, atol=1e-5, rtol=1e-5)

    # Performance path: bf16 MXU matmuls with f32 accumulation.
    out, emb = autoencoder_forward(x, params, compute_dtype=jnp.bfloat16)
    out = jax.block_until_ready(out)
    emb = jax.block_until_ready(emb)
    assert out.shape == (batch, in_shape) and emb.shape == (batch, enc_shape)
    assert jnp.allclose(out, ref_out, atol=5e-2, rtol=5e-2)
    assert jnp.allclose(emb, ref_emb, atol=5e-2, rtol=5e-2)

    # Multi-tile path with a masked trailing partial tile (grid = cdiv).
    x2 = jax.random.normal(k_x2, (40, in_shape), jnp.float32)
    ref_out2, ref_emb2 = reference_forward(x2, params)
    out2, emb2 = autoencoder_forward(x2, params, tile_b=16,
                                     compute_dtype=jnp.float32)
    out2 = jax.block_until_ready(out2)
    emb2 = jax.block_until_ready(emb2)
    assert out2.shape == (40, in_shape) and emb2.shape == (40, enc_shape)
    assert jnp.allclose(out2, ref_out2, atol=1e-5, rtol=1e-5)
    assert jnp.allclose(emb2, ref_emb2, atol=1e-5, rtol=1e-5)

    print("KERNEL_OK")
</pallas_src>

<mosaic_0001>
module attributes {stable_mosaic.version = 11 : i64} {
  func.func @_autoencoder_kernel(%arg0: i32, %arg1: memref<8x32xf32, #tpu.memory_space<vmem>>, %arg2: memref<32x128xf32, #tpu.memory_space<vmem>>, %arg3: memref<128x64xf32, #tpu.memory_space<vmem>>, %arg4: memref<64x8xf32, #tpu.memory_space<vmem>>, %arg5: memref<8x64xf32, #tpu.memory_space<vmem>>, %arg6: memref<64x128xf32, #tpu.memory_space<vmem>>, %arg7: memref<128x32xf32, #tpu.memory_space<vmem>>, %arg8: memref<8x128xf32, #tpu.memory_space<vmem>>, %arg9: memref<8x32xf32, #tpu.memory_space<vmem>>, %arg10: memref<8x8xf32, #tpu.memory_space<vmem>>) attributes {dimension_semantics = [#tpu.dimension_semantics<parallel>], iteration_bounds = array<i64: 1>, scalar_prefetch = 0 : i64, scratch_operands = 0 : i64, tpu.core_type = #tpu.core_type<tc>, window_params = [{transform_indices = @transform_0, window_bounds = array<i64: 8, 32>}, {pipeline_mode = #tpu.pipeline_mode<synchronous>, transform_indices = @transform_1, window_bounds = array<i64: 32, 128>}, {pipeline_mode = #tpu.pipeline_mode<synchronous>, transform_indices = @transform_2, window_bounds = array<i64: 128, 64>}, {pipeline_mode = #tpu.pipeline_mode<synchronous>, transform_indices = @transform_3, window_bounds = array<i64: 64, 8>}, {pipeline_mode = #tpu.pipeline_mode<synchronous>, transform_indices = @transform_4, window_bounds = array<i64: 8, 64>}, {pipeline_mode = #tpu.pipeline_mode<synchronous>, transform_indices = @transform_5, window_bounds = array<i64: 64, 128>}, {pipeline_mode = #tpu.pipeline_mode<synchronous>, transform_indices = @transform_6, window_bounds = array<i64: 128, 32>}, {pipeline_mode = #tpu.pipeline_mode<synchronous>, transform_indices = @transform_7, window_bounds = array<i64: 8, 128>}, {transform_indices = @transform_8, window_bounds = array<i64: 8, 32>}, {transform_indices = @transform_9, window_bounds = array<i64: 8, 8>}]} {
    %c0 = arith.constant 0 : index
    %c0_0 = arith.constant 0 : index
    %0 = vector.load %arg8[%c0, %c0_0] : memref<8x128xf32, #tpu.memory_space<vmem>>, vector<8x128xf32>
    %c0_1 = arith.constant 0 : index
    %c0_2 = arith.constant 0 : index
    %1 = vector.load %arg1[%c0_1, %c0_2] : memref<8x32xf32, #tpu.memory_space<vmem>>, vector<8x32xf32>
    %c0_3 = arith.constant 0 : index
    %c0_4 = arith.constant 0 : index
    %2 = vector.load %arg2[%c0_3, %c0_4] : memref<32x128xf32, #tpu.memory_space<vmem>>, vector<32x128xf32>
    %cst = arith.constant dense<0.000000e+00> : vector<8x128xf32>
    %3 = tpu.matmul %1, %2, %cst {dimension_numbers = #tpu.dot_dimension_numbers<[1], [0], [0], [1], [0, 0, 1, 1], [], []>} : vector<8x32xf32>, vector<32x128xf32>, vector<8x128xf32> -> vector<8x128xf32>
    %4 = vector.extract_strided_slice %0 {offsets = [0, 0], sizes = [1, 128], strides = [1, 1]} : vector<8x128xf32> to vector<1x128xf32>
    %5 = vector.broadcast %4 : vector<1x128xf32> to vector<8x128xf32>
    %6 = arith.addf %3, %5 : vector<8x128xf32>
    %cst_5 = arith.constant 0.000000e+00 : f32
    %7 = vector.broadcast %cst_5 : f32 to vector<8x128xf32>
    %8 = arith.maximumf %6, %7 : vector<8x128xf32>
    %c0_6 = arith.constant 0 : index
    %c0_7 = arith.constant 0 : index
    %9 = vector.load %arg3[%c0_6, %c0_7] : memref<128x64xf32, #tpu.memory_space<vmem>>, vector<128x64xf32>
    %cst_8 = arith.constant dense<0.000000e+00> : vector<8x64xf32>
    %10 = tpu.matmul %8, %9, %cst_8 {dimension_numbers = #tpu.dot_dimension_numbers<[1], [0], [0], [1], [0, 0, 1, 1], [], []>} : vector<8x128xf32>, vector<128x64xf32>, vector<8x64xf32> -> vector<8x64xf32>
    %11 = vector.extract_strided_slice %0 {offsets = [1, 0], sizes = [1, 64], strides = [1, 1]} : vector<8x128xf32> to vector<1x64xf32>
    %12 = vector.broadcast %11 : vector<1x64xf32> to vector<8x64xf32>
    %13 = arith.addf %10, %12 : vector<8x64xf32>
    %cst_9 = arith.constant 0.000000e+00 : f32
    %14 = vector.broadcast %cst_9 : f32 to vector<8x64xf32>
    %15 = arith.maximumf %13, %14 : vector<8x64xf32>
    %c0_10 = arith.constant 0 : index
    %c0_11 = arith.constant 0 : index
    %16 = vector.load %arg4[%c0_10, %c0_11] : memref<64x8xf32, #tpu.memory_space<vmem>>, vector<64x8xf32>
    %cst_12 = arith.constant dense<0.000000e+00> : vector<8x8xf32>
    %17 = tpu.matmul %15, %16, %cst_12 {dimension_numbers = #tpu.dot_dimension_numbers<[1], [0], [0], [1], [0, 0, 1, 1], [], []>} : vector<8x64xf32>, vector<64x8xf32>, vector<8x8xf32> -> vector<8x8xf32>
    %18 = vector.extract_strided_slice %0 {offsets = [2, 0], sizes = [1, 8], strides = [1, 1]} : vector<8x128xf32> to vector<1x8xf32>
    %19 = vector.broadcast %18 : vector<1x8xf32> to vector<8x8xf32>
    %20 = arith.addf %17, %19 : vector<8x8xf32>
    %c0_13 = arith.constant 0 : index
    %c0_14 = arith.constant 0 : index
    %21 = vector.load %arg10[%c0_13, %c0_14] : memref<8x8xf32, #tpu.memory_space<vmem>>, vector<8x8xf32>
    tpu.vector_store %arg10[%c0_13, %c0_14], %20 {strides = array<i32>} : memref<8x8xf32, #tpu.memory_space<vmem>>, vector<8x8xf32>,
    %c0_15 = arith.constant 0 : index
    %c0_16 = arith.constant 0 : index
    %22 = vector.load %arg5[%c0_15, %c0_16] : memref<8x64xf32, #tpu.memory_space<vmem>>, vector<8x64xf32>
    %cst_17 = arith.constant dense<0.000000e+00> : vector<8x64xf32>
    %23 = tpu.matmul %20, %22, %cst_17 {dimension_numbers = #tpu.dot_dimension_numbers<[1], [0], [0], [1], [0, 0, 1, 1], [], []>} : vector<8x8xf32>, vector<8x64xf32>, vector<8x64xf32> -> vector<8x64xf32>
    %24 = vector.extract_strided_slice %0 {offsets = [3, 0], sizes = [1, 64], strides = [1, 1]} : vector<8x128xf32> to vector<1x64xf32>
    %25 = vector.broadcast %24 : vector<1x64xf32> to vector<8x64xf32>
    %26 = arith.addf %23, %25 : vector<8x64xf32>
    %cst_18 = arith.constant 0.000000e+00 : f32
    %27 = vector.broadcast %cst_18 : f32 to vector<8x64xf32>
    %28 = arith.maximumf %26, %27 : vector<8x64xf32>
    %c0_19 = arith.constant 0 : index
    %c0_20 = arith.constant 0 : index
    %29 = vector.load %arg6[%c0_19, %c0_20] : memref<64x128xf32, #tpu.memory_space<vmem>>, vector<64x128xf32>
    %cst_21 = arith.constant dense<0.000000e+00> : vector<8x128xf32>
    %30 = tpu.matmul %28, %29, %cst_21 {dimension_numbers = #tpu.dot_dimension_numbers<[1], [0], [0], [1], [0, 0, 1, 1], [], []>} : vector<8x64xf32>, vector<64x128xf32>, vector<8x128xf32> -> vector<8x128xf32>
    %31 = vector.extract_strided_slice %0 {offsets = [4, 0], sizes = [1, 128], strides = [1, 1]} : vector<8x128xf32> to vector<1x128xf32>
    %32 = vector.broadcast %31 : vector<1x128xf32> to vector<8x128xf32>
    %33 = arith.addf %30, %32 : vector<8x128xf32>
    %cst_22 = arith.constant 0.000000e+00 : f32
    %34 = vector.broadcast %cst_22 : f32 to vector<8x128xf32>
    %35 = arith.maximumf %33, %34 : vector<8x128xf32>
    %c0_23 = arith.constant 0 : index
    %c0_24 = arith.constant 0 : index
    %36 = vector.load %arg7[%c0_23, %c0_24] : memref<128x32xf32, #tpu.memory_space<vmem>>, vector<128x32xf32>
    %cst_25 = arith.constant dense<0.000000e+00> : vector<8x32xf32>
    %37 = tpu.matmul %35, %36, %cst_25 {dimension_numbers = #tpu.dot_dimension_numbers<[1], [0], [0], [1], [0, 0, 1, 1], [], []>} : vector<8x128xf32>, vector<128x32xf32>, vector<8x32xf32> -> vector<8x32xf32>
    %38 = vector.extract_strided_slice %0 {offsets = [5, 0], sizes = [1, 32], strides = [1, 1]} : vector<8x128xf32> to vector<1x32xf32>
    %39 = vector.broadcast %38 : vector<1x32xf32> to vector<8x32xf32>
    %40 = arith.addf %37, %39 : vector<8x32xf32>
    %c0_26 = arith.constant 0 : index
    %c0_27 = arith.constant 0 : index
    %41 = vector.load %arg9[%c0_26, %c0_27] : memref<8x32xf32, #tpu.memory_space<vmem>>, vector<8x32xf32>
    tpu.vector_store %arg9[%c0_26, %c0_27], %40 {strides = array<i32>} : memref<8x32xf32, #tpu.memory_space<vmem>>, vector<8x32xf32>,
    return
  }
  func.func @transform_0(%arg0: i32) -> (i32, i32) {
    %c0_i32 = arith.constant 0 : i32
    %c0_i32_0 = arith.constant 0 : i32
    return %arg0, %c0_i32 : i32, i32
  }
  func.func @transform_1(%arg0: i32) -> (i32, i32) {
    %c0_i32 = arith.constant 0 : i32
    %c0_i32_0 = arith.constant 0 : i32
    %c0_i32_1 = arith.constant 0 : i32
    return %c0_i32, %c0_i32_0 : i32, i32
  }
  func.func @transform_2(%arg0: i32) -> (i32, i32) {
    %c0_i32 = arith.constant 0 : i32
    %c0_i32_0 = arith.constant 0 : i32
    %c0_i32_1 = arith.constant 0 : i32
    return %c0_i32, %c0_i32_0 : i32, i32
  }
  func.func @transform_3(%arg0: i32) -> (i32, i32) {
    %c0_i32 = arith.constant 0 : i32
    %c0_i32_0 = arith.constant 0 : i32
    %c0_i32_1 = arith.constant 0 : i32
    return %c0_i32, %c0_i32_0 : i32, i32
  }
  func.func @transform_4(%arg0: i32) -> (i32, i32) {
    %c0_i32 = arith.constant 0 : i32
    %c0_i32_0 = arith.constant 0 : i32
    %c0_i32_1 = arith.constant 0 : i32
    return %c0_i32, %c0_i32_0 : i32, i32
  }
  func.func @transform_5(%arg0: i32) -> (i32, i32) {
    %c0_i32 = arith.constant 0 : i32
    %c0_i32_0 = arith.constant 0 : i32
    %c0_i32_1 = arith.constant 0 : i32
    return %c0_i32, %c0_i32_0 : i32, i32
  }
  func.func @transform_6(%arg0: i32) -> (i32, i32) {
    %c0_i32 = arith.constant 0 : i32
    %c0_i32_0 = arith.constant 0 : i32
    %c0_i32_1 = arith.constant 0 : i32
    return %c0_i32, %c0_i32_0 : i32, i32
  }
  func.func @transform_7(%arg0: i32) -> (i32, i32) {
    %c0_i32 = arith.constant 0 : i32
    %c0_i32_0 = arith.constant 0 : i32
    %c0_i32_1 = arith.constant 0 : i32
    return %c0_i32, %c0_i32_0 : i32, i32
  }
  func.func @transform_8(%arg0: i32) -> (i32, i32) {
    %c0_i32 = arith.constant 0 : i32
    %c0_i32_0 = arith.constant 0 : i32
    return %arg0, %c0_i32 : i32, i32
  }
  func.func @transform_9(%arg0: i32) -> (i32, i32) {
    %c0_i32 = arith.constant 0 : i32
    %c0_i32_0 = arith.constant 0 : i32
    return %arg0, %c0_i32 : i32, i32
  }
}

</mosaic_0001>

<llo_original>
// kernel: tpu_custom_call.1
$region0: #{tpu_custom_call.1}
  #allocation0 [shape = 'u32[]', space=smem, size = 0x4, offset = 0x4, fixed_abs, tag = 'smem constant byte address 0x4 - core index']
  #allocation1 [shape = 'u32[144,128]{1,0:T(1,128)}', space=vmem, size = 0x12000, scoped, tag = 'internal scratch']
  %s0 = inlined_call_operand.vmem [shape: f32[8,32], index: 0, kind: input, shape index: {}]
  %s1 = inlined_call_operand.vmem [shape: f32[32,128], index: 1, kind: input, shape index: {}]
  %s2 = inlined_call_operand.vmem [shape: f32[128,64], index: 2, kind: input, shape index: {}]
  %s3 = inlined_call_operand.vmem [shape: f32[64,8], index: 3, kind: input, shape index: {}]
  %s4 = inlined_call_operand.vmem [shape: f32[8,64], index: 4, kind: input, shape index: {}]
  %s5 = inlined_call_operand.vmem [shape: f32[64,128], index: 5, kind: input, shape index: {}]
  %s6 = inlined_call_operand.vmem [shape: f32[128,32], index: 6, kind: input, shape index: {}]
  %s7 = inlined_call_operand.vmem [shape: f32[8,128], index: 7, kind: input, shape index: {}]
  %s8 = inlined_call_operand.hbm [shape: f32[8,32], index: 8, kind: output, shape index: {0}]
  %s9 = inlined_call_operand.hbm [shape: f32[8,8], index: 9, kind: output, shape index: {1}]
  %10 = xla_tuple %s8, %s9
  %s11 = sld [smem:[#allocation0]]
  $region50: #{tpu_custom_call.1} parent=0
    _
  %s13 = ssub.s32 1, %s11
  %s14 = scalar_select 0, %s13, %s11
  $region1: #{tpu_custom_call.1} parent=0
    #allocation2 [shape = 'u8[4096]{0}', space=vmem, size = 0x1000, scoped, tag = 'output window, operand 0, single buffered']
    #allocation3 [shape = 's32[1]{0}', space=sflag, size = 0x4, scoped, tag = 'scoped memory for tpu_custom_call.1']
    #allocation4 [shape = 'u8[4096]{0}', space=vmem, size = 0x1000, scoped, tag = 'output window, operand 1, single buffered']
    #allocation5 [shape = 's32[1]{0}', space=sflag, size = 0x4, scoped, tag = 'scoped memory for tpu_custom_call.1']
    %15 = vsyncpa [#allocation3], 0
    %16 = vsyncpa [#allocation5], 0
    // Predicated region
    $region2: #{tpu_custom_call.1} parent=1 // pred_check
      _
    $region3: #{tpu_custom_call.1} parent=1 // pred_check_branch
      %18 = sbr.rel (0) target = $region5
    $region4: #{tpu_custom_call.1} parent=1 // pred_region
      _
    $region5: #{tpu_custom_call.1} parent=1 // pred_fallthru
      _
    // Predicated region
    $region6: #{tpu_custom_call.1} parent=1 // pred_check
      _
    $region7: #{tpu_custom_call.1} parent=1 // pred_check_branch
      %20 = sbr.rel (0) target = $region9
    $region8: #{tpu_custom_call.1} parent=1 // pred_region
      _
    $region9: #{tpu_custom_call.1} parent=1 // pred_fallthru
      _
    // Predicated region
    $region10: #{tpu_custom_call.1} parent=1 // pred_check
      _
    $region11: #{tpu_custom_call.1} parent=1 // pred_check_branch
      %22 = sbr.rel (0) target = $region13
    $region12: #{tpu_custom_call.1} parent=1 // pred_region
      _
    $region13: #{tpu_custom_call.1} parent=1 // pred_fallthru
      _
    // Predicated region
    $region14: #{tpu_custom_call.1} parent=1 // pred_check
      _
    $region15: #{tpu_custom_call.1} parent=1 // pred_check_branch
      %24 = sbr.rel (0) target = $region17
    $region16: #{tpu_custom_call.1} parent=1 // pred_region
      _
    $region17: #{tpu_custom_call.1} parent=1 // pred_fallthru
      _
    // Predicated region
    $region18: #{tpu_custom_call.1} parent=1 // pred_check
      _
    $region19: #{tpu_custom_call.1} parent=1 // pred_check_branch
      %26 = sbr.rel (0) target = $region21
    $region20: #{tpu_custom_call.1} parent=1 // pred_region
      _
    $region21: #{tpu_custom_call.1} parent=1 // pred_fallthru
      _
    // Predicated region
    $region22: #{tpu_custom_call.1} parent=1 // pred_check
      _
    $region23: #{tpu_custom_call.1} parent=1 // pred_check_branch
      %28 = sbr.rel (0) target = $region25
    $region24: #{tpu_custom_call.1} parent=1 // pred_region
      _
    $region25: #{tpu_custom_call.1} parent=1 // pred_fallthru
      _
    // Predicated region
    $region26: #{tpu_custom_call.1} parent=1 // pred_check
      _
    $region27: #{tpu_custom_call.1} parent=1 // pred_check_branch
      %30 = sbr.rel (0) target = $region29
    $region28: #{tpu_custom_call.1} parent=1 // pred_region
      _
    $region29: #{tpu_custom_call.1} parent=1 // pred_fallthru
      _
    // Predicated region
    $region30: #{tpu_custom_call.1} parent=1 // pred_check
      _
    $region31: #{tpu_custom_call.1} parent=1 // pred_check_branch
      %32 = sbr.rel (0) target = $region33
    $region32: #{tpu_custom_call.1} parent=1 // pred_region
      _
    $region33: #{tpu_custom_call.1} parent=1 // pred_fallthru
      _
    %v33 = vld [vmem:[%s7] sm:$0xff]
    %v34 = vld [vmem:[%s0] sm:$0xff]
    %v35 = vld [vmem:[%s1] sm:$0xff]
    %v36 = vld [vmem:[%s1 + $0x8] sm:$0xff]
    %v37 = vld [vmem:[%s1 + $0x10] sm:$0xff]
    %v38 = vld [vmem:[%s1 + $0x18] sm:$0xff]
    %v39 = vlaneseq
    %v40 = vshrl.u32 %v39, 7
    %v41 = vsub.s32 0, %v40
    %v42 = vrot.slane %v33, %v41
    %vm43 = vcmask 261120
    %v45 = vsel %vm43, %v34, 0
    %47 = vmatprep.subr.mxu0 0.0
    %48 = vmatpush1.msra.mxu0 0.0
    %49 = vmatprep.subr.mxu0 0.0
    %50 = vmatpush1.msra.mxu0 0.0
    %51 = vmatprep.subr.mxu0 0.0
    %52 = vmatpush1.msra.mxu0 0.0
    %53 = vmatprep.subr.mxu0 0.0
    %54 = vmatpush1.msra.mxu0 0.0
    %55 = vmatprep.subr.mxu0 0.0
    %56 = vmatpush1.msra.mxu0 0.0
    %57 = vmatprep.subr.mxu0 0.0
    %58 = vmatpush1.msra.mxu0 0.0
    %59 = vmatprep.subr.mxu0 0.0
    %60 = vmatpush1.msra.mxu0 0.0
    %61 = vmatprep.subr.mxu0 0.0
    %62 = vmatpush1.msra.mxu0 0.0
    %63 = vmatprep.subr.mxu0 0.0
    %64 = vmatpush1.msra.mxu0 0.0
    %65 = vmatprep.subr.mxu0 0.0
    %66 = vmatpush1.msra.mxu0 0.0
    %67 = vmatprep.subr.mxu0 0.0
    %68 = vmatpush1.msra.mxu0 0.0
    %69 = vmatprep.subr.mxu0 0.0
    %70 = vmatpush1.msra.mxu0 0.0
    %71 = vmatprep.subr.mxu0 0.0
    %72 = vmatpush1.msra.mxu0 %v38
    %73 = vmatprep.subr.mxu0 0.0
    %74 = vmatpush1.msra.mxu0 %v37
    %75 = vmatprep.subr.mxu0 0.0
    %76 = vmatpush1.msra.mxu0 %v36
    %77 = vmatprep.subr.mxu0 0.0
    %78 = vmatpush1.msra.mxu0 %v35
    %79 = vmatprep.subr.mxu0 0.0
    %80 = vmatpush2.msra.mxu0 0.0
    %81 = vmatprep.subr.mxu0 0.0
    %82 = vmatpush2.msra.mxu0 0.0
    %83 = vmatprep.subr.mxu0 0.0
    %84 = vmatpush2.msra.mxu0 0.0
    %85 = vmatprep.subr.mxu0 0.0
    %86 = vmatpush2.msra.mxu0 0.0
    %87 = vmatprep.subr.mxu0 0.0
    %88 = vmatpush2.msra.mxu0 0.0
    %89 = vmatprep.subr.mxu0 0.0
    %90 = vmatpush2.msra.mxu0 0.0
    %91 = vmatprep.subr.mxu0 0.0
    %92 = vmatpush2.msra.mxu0 0.0
    %93 = vmatprep.subr.mxu0 0.0
    %94 = vmatpush2.msra.mxu0 0.0
    %95 = vmatprep.subr.mxu0 0.0
    %96 = vmatpush2.msra.mxu0 0.0
    %97 = vmatprep.subr.mxu0 0.0
    %98 = vmatpush2.msra.mxu0 0.0
    %99 = vmatprep.subr.mxu0 0.0
    %100 = vmatpush2.msra.mxu0 0.0
    %101 = vmatprep.subr.mxu0 0.0
    %102 = vmatpush2.msra.mxu0 0.0
    %103 = vmatprep.subr.mxu0 0.0
    %104 = vmatpush2.msra.mxu0 0.0
    %105 = vmatprep.subr.mxu0 0.0
    %106 = vmatpush2.msra.mxu0 0.0
    %107 = vmatprep.subr.mxu0 0.0
    %108 = vmatpush2.msra.mxu0 0.0
    %109 = vmatprep.subr.mxu0 0.0
    %110 = vmatpush2.msra.mxu0 0.0
    %111 = vmatprep.mubr.f32.mxu0 0.0
    %112 = vmatmul.mubr.f32.gmra.mxu0 %v45
    %v113 = vpop.f32.mrf.mxu0
    %v114 = vadd.f32 %v42, %v113
    %v115 = vpop.f32.mrf.mxu0
    %116 = vdwg.mxu0
    %v117 = vmax.f32 %v114, 0.0
    %v118 = vld [vmem:[%s2] sm:$0xff]
    %v119 = vld [vmem:[%s2 + $0x8] sm:$0xff]
    %v120 = vld [vmem:[%s2 + $0x10] sm:$0xff]
    %v121 = vld [vmem:[%s2 + $0x18] sm:$0xff]
    %v122 = vld [vmem:[%s2 + $0x20] sm:$0xff]
    %v123 = vld [vmem:[%s2 + $0x28] sm:$0xff]
    %v124 = vld [vmem:[%s2 + $0x30] sm:$0xff]
    %v125 = vld [vmem:[%s2 + $0x38] sm:$0xff]
    %v126 = vld [vmem:[%s2 + $0x40] sm:$0xff]
    %v127 = vld [vmem:[%s2 + $0x48] sm:$0xff]
    %v128 = vld [vmem:[%s2 + $0x50] sm:$0xff]
    %v129 = vld [vmem:[%s2 + $0x58] sm:$0xff]
    %v130 = vld [vmem:[%s2 + $0x60] sm:$0xff]
    %v131 = vld [vmem:[%s2 + $0x68] sm:$0xff]
    %v132 = vld [vmem:[%s2 + $0x70] sm:$0xff]
    %v133 = vld [vmem:[%s2 + $0x78] sm:$0xff]
    %v134 = vlaneseq
    %v135 = vshrl.u32 %v134, 7
    %v136 = vsub.s32 1, %v135
    %v137 = vrot.slane %v33, %v136
    %138 = vmatprep.subr.mxu0 0.0
    %139 = vmatpush1.msra.mxu0 %v133
    %140 = vmatprep.subr.mxu0 0.0
    %141 = vmatpush1.msra.mxu0 %v132
    %142 = vmatprep.subr.mxu0 0.0
    %143 = vmatpush1.msra.mxu0 %v131
    %144 = vmatprep.subr.mxu0 0.0
    %145 = vmatpush1.msra.mxu0 %v130
    %146 = vmatprep.subr.mxu0 0.0
    %147 = vmatpush1.msra.mxu0 %v129
    %148 = vmatprep.subr.mxu0 0.0
    %149 = vmatpush1.msra.mxu0 %v128
    %150 = vmatprep.subr.mxu0 0.0
    %151 = vmatpush1.msra.mxu0 %v127
    %152 = vmatprep.subr.mxu0 0.0
    %153 = vmatpush1.msra.mxu0 %v126
    %154 = vmatprep.subr.mxu0 0.0
    %155 = vmatpush1.msra.mxu0 %v125
    %156 = vmatprep.subr.mxu0 0.0
    %157 = vmatpush1.msra.mxu0 %v124
    %158 = vmatprep.subr.mxu0 0.0
    %159 = vmatpush1.msra.mxu0 %v123
    %160 = vmatprep.subr.mxu0 0.0
    %161 = vmatpush1.msra.mxu0 %v122
    %162 = vmatprep.subr.mxu0 0.0
    %163 = vmatpush1.msra.mxu0 %v121
    %164 = vmatprep.subr.mxu0 0.0
    %165 = vmatpush1.msra.mxu0 %v120
    %166 = vmatprep.subr.mxu0 0.0
    %167 = vmatpush1.msra.mxu0 %v119
    %168 = vmatprep.subr.mxu0 0.0
    %169 = vmatpush1.msra.mxu0 %v118
    %170 = vmatprep.subr.mxu0 0.0
    %171 = vmatpush2.msra.mxu0 0.0
    %172 = vmatprep.subr.mxu0 0.0
    %173 = vmatpush2.msra.mxu0 0.0
    %174 = vmatprep.subr.mxu0 0.0
    %175 = vmatpush2.msra.mxu0 0.0
    %176 = vmatprep.subr.mxu0 0.0
    %177 = vmatpush2.msra.mxu0 0.0
    %178 = vmatprep.subr.mxu0 0.0
    %179 = vmatpush2.msra.mxu0 0.0
    %180 = vmatprep.subr.mxu0 0.0
    %181 = vmatpush2.msra.mxu0 0.0
    %182 = vmatprep.subr.mxu0 0.0
    %183 = vmatpush2.msra.mxu0 0.0
    %184 = vmatprep.subr.mxu0 0.0
    %185 = vmatpush2.msra.mxu0 0.0
    %186 = vmatprep.subr.mxu0 0.0
    %187 = vmatpush2.msra.mxu0 0.0
    %188 = vmatprep.subr.mxu0 0.0
    %189 = vmatpush2.msra.mxu0 0.0
    %190 = vmatprep.subr.mxu0 0.0
    %191 = vmatpush2.msra.mxu0 0.0
    %192 = vmatprep.subr.mxu0 0.0
    %193 = vmatpush2.msra.mxu0 0.0
    %194 = vmatprep.subr.mxu0 0.0
    %195 = vmatpush2.msra.mxu0 0.0
    %196 = vmatprep.subr.mxu0 0.0
    %197 = vmatpush2.msra.mxu0 0.0
    %198 = vmatprep.subr.mxu0 0.0
    %199 = vmatpush2.msra.mxu0 0.0
    %200 = vmatprep.subr.mxu0 0.0
    %201 = vmatpush2.msra.mxu0 0.0
    %202 = vmatprep.mubr.f32.mxu0 0.0
    %203 = vmatmul.mubr.f32.gmra.mxu0 %v117
    %v204 = vpop.f32.mrf.mxu0
    %v205 = vadd.f32 %v137, %v204
    %v206 = vpop.f32.mrf.mxu0
    %207 = vdwg.mxu0
    %v208 = vmax.f32 %v205, 0.0
    %v209 = vld [vmem:[%s3] sm:$0xff]
    %v210 = vld [vmem:[%s3 + $0x8] sm:$0xff]
    %v211 = vld [vmem:[%s3 + $0x10] sm:$0xff]
    %v212 = vld [vmem:[%s3 + $0x18] sm:$0xff]
    %v213 = vld [vmem:[%s3 + $0x20] sm:$0xff]
    %v214 = vld [vmem:[%s3 + $0x28] sm:$0xff]
    %v215 = vld [vmem:[%s3 + $0x30] sm:$0xff]
    %v216 = vld [vmem:[%s3 + $0x38] sm:$0xff]
    %v217 = vlaneseq
    %v218 = vshrl.u32 %v217, 7
    %v219 = vsub.s32 2, %v218
    %v220 = vrot.slane %v33, %v219
    %vm221 = vcmask 523264
    %v223 = vsel %vm221, %v208, 0
    %225 = vmatprep.subr.mxu0 0.0
    %226 = vmatpush1.msra.mxu0 0.0
    %227 = vmatprep.subr.mxu0 0.0
    %228 = vmatpush1.msra.mxu0 0.0
    %229 = vmatprep.subr.mxu0 0.0
    %230 = vmatpush1.msra.mxu0 0.0
    %231 = vmatprep.subr.mxu0 0.0
    %232 = vmatpush1.msra.mxu0 0.0
    %233 = vmatprep.subr.mxu0 0.0
    %234 = vmatpush1.msra.mxu0 0.0
    %235 = vmatprep.subr.mxu0 0.0
    %236 = vmatpush1.msra.mxu0 0.0
    %237 = vmatprep.subr.mxu0 0.0
    %238 = vmatpush1.msra.mxu0 0.0
    %239 = vmatprep.subr.mxu0 0.0
    %240 = vmatpush1.msra.mxu0 0.0
    %241 = vmatprep.subr.mxu0 0.0
    %242 = vmatpush1.msra.mxu0 %v216
    %243 = vmatprep.subr.mxu0 0.0
    %244 = vmatpush1.msra.mxu0 %v215
    %245 = vmatprep.subr.mxu0 0.0
    %246 = vmatpush1.msra.mxu0 %v214
    %247 = vmatprep.subr.mxu0 0.0
    %248 = vmatpush1.msra.mxu0 %v213
    %249 = vmatprep.subr.mxu0 0.0
    %250 = vmatpush1.msra.mxu0 %v212
    %251 = vmatprep.subr.mxu0 0.0
    %252 = vmatpush1.msra.mxu0 %v211
    %253 = vmatprep.subr.mxu0 0.0
    %254 = vmatpush1.msra.mxu0 %v210
    %255 = vmatprep.subr.mxu0 0.0
    %256 = vmatpush1.msra.mxu0 %v209
    %257 = vmatprep.subr.mxu0 0.0
    %258 = vmatpush2.msra.mxu0 0.0
    %259 = vmatprep.subr.mxu0 0.0
    %260 = vmatpush2.msra.mxu0 0.0
    %261 = vmatprep.subr.mxu0 0.0
    %262 = vmatpush2.msra.mxu0 0.0
    %263 = vmatprep.subr.mxu0 0.0
    %264 = vmatpush2.msra.mxu0 0.0
    %265 = vmatprep.subr.mxu0 0.0
    %266 = vmatpush2.msra.mxu0 0.0
    %267 = vmatprep.subr.mxu0 0.0
    %268 = vmatpush2.msra.mxu0 0.0
    %269 = vmatprep.subr.mxu0 0.0
    %270 = vmatpush2.msra.mxu0 0.0
    %271 = vmatprep.subr.mxu0 0.0
    %272 = vmatpush2.msra.mxu0 0.0
    %273 = vmatprep.subr.mxu0 0.0
    %274 = vmatpush2.msra.mxu0 0.0
    %275 = vmatprep.subr.mxu0 0.0
    %276 = vmatpush2.msra.mxu0 0.0
    %277 = vmatprep.subr.mxu0 0.0
    %278 = vmatpush2.msra.mxu0 0.0
    %279 = vmatprep.subr.mxu0 0.0
    %280 = vmatpush2.msra.mxu0 0.0
    %281 = vmatprep.subr.mxu0 0.0
    %282 = vmatpush2.msra.mxu0 0.0
    %283 = vmatprep.subr.mxu0 0.0
    %284 = vmatpush2.msra.mxu0 0.0
    %285 = vmatprep.subr.mxu0 0.0
    %286 = vmatpush2.msra.mxu0 0.0
    %287 = vmatprep.subr.mxu0 0.0
    %288 = vmatpush2.msra.mxu0 0.0
    %289 = vmatprep.mubr.f32.mxu0 0.0
    %290 = vmatmul.mubr.f32.gmra.mxu0 %v223
    %v291 = vpop.f32.mrf.mxu0
    %v292 = vadd.f32 %v220, %v291
    %v293 = vpop.f32.mrf.mxu0
    %294 = vdwg.mxu0
    %vm295 = vcmask 64512
    %296 = vst.msk [vmem:[#allocation4] sm:$0xff] %vm295, %v292
    %v297 = vld [vmem:[%s4] sm:$0xff]
    %v298 = vlaneseq
    %v299 = vshrl.u32 %v298, 7
    %v300 = vsub.s32 3, %v299
    %v301 = vrot.slane %v33, %v300
    %v303 = vsel %vm295, %v292, 0
    %305 = vmatprep.subr.mxu0 0.0
    %306 = vmatpush1.msra.mxu0 0.0
    %307 = vmatprep.subr.mxu0 0.0
    %308 = vmatpush1.msra.mxu0 0.0
    %309 = vmatprep.subr.mxu0 0.0
    %310 = vmatpush1.msra.mxu0 0.0
    %311 = vmatprep.subr.mxu0 0.0
    %312 = vmatpush1.msra.mxu0 0.0
    %313 = vmatprep.subr.mxu0 0.0
    %314 = vmatpush1.msra.mxu0 0.0
    %315 = vmatprep.subr.mxu0 0.0
    %316 = vmatpush1.msra.mxu0 0.0
    %317 = vmatprep.subr.mxu0 0.0
    %318 = vmatpush1.msra.mxu0 0.0
    %319 = vmatprep.subr.mxu0 0.0
    %320 = vmatpush1.msra.mxu0 0.0
    %321 = vmatprep.subr.mxu0 0.0
    %322 = vmatpush1.msra.mxu0 0.0
    %323 = vmatprep.subr.mxu0 0.0
    %324 = vmatpush1.msra.mxu0 0.0
    %325 = vmatprep.subr.mxu0 0.0
    %326 = vmatpush1.msra.mxu0 0.0
    %327 = vmatprep.subr.mxu0 0.0
    %328 = vmatpush1.msra.mxu0 0.0
    %329 = vmatprep.subr.mxu0 0.0
    %330 = vmatpush1.msra.mxu0 0.0
    %331 = vmatprep.subr.mxu0 0.0
    %332 = vmatpush1.msra.mxu0 0.0
    %333 = vmatprep.subr.mxu0 0.0
    %334 = vmatpush1.msra.mxu0 0.0
    %335 = vmatprep.subr.mxu0 0.0
    %336 = vmatpush1.msra.mxu0 %v297
    %337 = vmatprep.subr.mxu0 0.0
    %338 = vmatpush2.msra.mxu0 0.0
    %339 = vmatprep.subr.mxu0 0.0
    %340 = vmatpush2.msra.mxu0 0.0
    %341 = vmatprep.subr.mxu0 0.0
    %342 = vmatpush2.msra.mxu0 0.0
    %343 = vmatprep.subr.mxu0 0.0
    %344 = vmatpush2.msra.mxu0 0.0
    %345 = vmatprep.subr.mxu0 0.0
    %346 = vmatpush2.msra.mxu0 0.0
    %347 = vmatprep.subr.mxu0 0.0
    %348 = vmatpush2.msra.mxu0 0.0
    %349 = vmatprep.subr.mxu0 0.0
    %350 = vmatpush2.msra.mxu0 0.0
    %351 = vmatprep.subr.mxu0 0.0
    %352 = vmatpush2.msra.mxu0 0.0
    %353 = vmatprep.subr.mxu0 0.0
    %354 = vmatpush2.msra.mxu0 0.0
    %355 = vmatprep.subr.mxu0 0.0
    %356 = vmatpush2.msra.mxu0 0.0
    %357 = vmatprep.subr.mxu0 0.0
    %358 = vmatpush2.msra.mxu0 0.0
    %359 = vmatprep.subr.mxu0 0.0
    %360 = vmatpush2.msra.mxu0 0.0
    %361 = vmatprep.subr.mxu0 0.0
    %362 = vmatpush2.msra.mxu0 0.0
    %363 = vmatprep.subr.mxu0 0.0
    %364 = vmatpush2.msra.mxu0 0.0
    %365 = vmatprep.subr.mxu0 0.0
    %366 = vmatpush2.msra.mxu0 0.0
    %367 = vmatprep.subr.mxu0 0.0
    %368 = vmatpush2.msra.mxu0 0.0
    %369 = vmatprep.mubr.f32.mxu0 0.0
    %370 = vmatmul.mubr.f32.gmra.mxu0 %v303
    %v371 = vpop.f32.mrf.mxu0
    %v372 = vadd.f32 %v301, %v371
    %v373 = vpop.f32.mrf.mxu0
    %374 = vdwg.mxu0
    %v375 = vmax.f32 %v372, 0.0
    %v376 = vld [vmem:[%s5] sm:$0xff]
    %v377 = vld [vmem:[%s5 + $0x8] sm:$0xff]
    %v378 = vld [vmem:[%s5 + $0x10] sm:$0xff]
    %v379 = vld [vmem:[%s5 + $0x18] sm:$0xff]
    %v380 = vld [vmem:[%s5 + $0x20] sm:$0xff]
    %v381 = vld [vmem:[%s5 + $0x28] sm:$0xff]
    %v382 = vld [vmem:[%s5 + $0x30] sm:$0xff]
    %v383 = vld [vmem:[%s5 + $0x38] sm:$0xff]
    %v384 = vlaneseq
    %v385 = vshrl.u32 %v384, 7
    %v386 = vsub.s32 4, %v385
    %v387 = vrot.slane %v33, %v386
    %v389 = vsel %vm221, %v375, 0
    %391 = vmatprep.subr.mxu0 0.0
    %392 = vmatpush1.msra.mxu0 0.0
    %393 = vmatprep.subr.mxu0 0.0
    %394 = vmatpush1.msra.mxu0 0.0
    %395 = vmatprep.subr.mxu0 0.0
    %396 = vmatpush1.msra.mxu0 0.0
    %397 = vmatprep.subr.mxu0 0.0
    %398 = vmatpush1.msra.mxu0 0.0
    %399 = vmatprep.subr.mxu0 0.0
    %400 = vmatpush1.msra.mxu0 0.0
    %401 = vmatprep.subr.mxu0 0.0
    %402 = vmatpush1.msra.mxu0 0.0
    %403 = vmatprep.subr.mxu0 0.0
    %404 = vmatpush1.msra.mxu0 0.0
    %405 = vmatprep.subr.mxu0 0.0
    %406 = vmatpush1.msra.mxu0 0.0
    %407 = vmatprep.subr.mxu0 0.0
    %408 = vmatpush1.msra.mxu0 %v383
    %409 = vmatprep.subr.mxu0 0.0
    %410 = vmatpush1.msra.mxu0 %v382
    %411 = vmatprep.subr.mxu0 0.0
    %412 = vmatpush1.msra.mxu0 %v381
    %413 = vmatprep.subr.mxu0 0.0
    %414 = vmatpush1.msra.mxu0 %v380
    %415 = vmatprep.subr.mxu0 0.0
    %416 = vmatpush1.msra.mxu0 %v379
    %417 = vmatprep.subr.mxu0 0.0
    %418 = vmatpush1.msra.mxu0 %v378
    %419 = vmatprep.subr.mxu0 0.0
    %420 = vmatpush1.msra.mxu0 %v377
    %421 = vmatprep.subr.mxu0 0.0
    %422 = vmatpush1.msra.mxu0 %v376
    %423 = vmatprep.subr.mxu0 0.0
    %424 = vmatpush2.msra.mxu0 0.0
    %425 = vmatprep.subr.mxu0 0.0
    %426 = vmatpush2.msra.mxu0 0.0
    %427 = vmatprep.subr.mxu0 0.0
    %428 = vmatpush2.msra.mxu0 0.0
    %429 = vmatprep.subr.mxu0 0.0
    %430 = vmatpush2.msra.mxu0 0.0
    %431 = vmatprep.subr.mxu0 0.0
    %432 = vmatpush2.msra.mxu0 0.0
    %433 = vmatprep.subr.mxu0 0.0
    %434 = vmatpush2.msra.mxu0 0.0
    %435 = vmatprep.subr.mxu0 0.0
    %436 = vmatpush2.msra.mxu0 0.0
    %437 = vmatprep.subr.mxu0 0.0
    %438 = vmatpush2.msra.mxu0 0.0
    %439 = vmatprep.subr.mxu0 0.0
    %440 = vmatpush2.msra.mxu0 0.0
    %441 = vmatprep.subr.mxu0 0.0
    %442 = vmatpush2.msra.mxu0 0.0
    %443 = vmatprep.subr.mxu0 0.0
    %444 = vmatpush2.msra.mxu0 0.0
    %445 = vmatprep.subr.mxu0 0.0
    %446 = vmatpush2.msra.mxu0 0.0
    %447 = vmatprep.subr.mxu0 0.0
    %448 = vmatpush2.msra.mxu0 0.0
    %449 = vmatprep.subr.mxu0 0.0
    %450 = vmatpush2.msra.mxu0 0.0
    %451 = vmatprep.subr.mxu0 0.0
    %452 = vmatpush2.msra.mxu0 0.0
    %453 = vmatprep.subr.mxu0 0.0
    %454 = vmatpush2.msra.mxu0 0.0
    %455 = vmatprep.mubr.f32.mxu0 0.0
    %456 = vmatmul.mubr.f32.gmra.mxu0 %v389
    %v457 = vpop.f32.mrf.mxu0
    %v458 = vadd.f32 %v387, %v457
    %v459 = vpop.f32.mrf.mxu0
    %460 = vdwg.mxu0
    %v461 = vmax.f32 %v458, 0.0
    %v462 = vld [vmem:[%s6] sm:$0xff]
    %v463 = vld [vmem:[%s6 + $0x8] sm:$0xff]
    %v464 = vld [vmem:[%s6 + $0x10] sm:$0xff]
    %v465 = vld [vmem:[%s6 + $0x18] sm:$0xff]
    %v466 = vld [vmem:[%s6 + $0x20] sm:$0xff]
    %v467 = vld [vmem:[%s6 + $0x28] sm:$0xff]
    %v468 = vld [vmem:[%s6 + $0x30] sm:$0xff]
    %v469 = vld [vmem:[%s6 + $0x38] sm:$0xff]
    %v470 = vld [vmem:[%s6 + $0x40] sm:$0xff]
    %v471 = vld [vmem:[%s6 + $0x48] sm:$0xff]
    %v472 = vld [vmem:[%s6 + $0x50] sm:$0xff]
    %v473 = vld [vmem:[%s6 + $0x58] sm:$0xff]
    %v474 = vld [vmem:[%s6 + $0x60] sm:$0xff]
    %v475 = vld [vmem:[%s6 + $0x68] sm:$0xff]
    %v476 = vld [vmem:[%s6 + $0x70] sm:$0xff]
    %v477 = vld [vmem:[%s6 + $0x78] sm:$0xff]
    %v478 = vlaneseq
    %v479 = vshrl.u32 %v478, 7
    %v480 = vsub.s32 5, %v479
    %v481 = vrot.slane %v33, %v480
    %482 = vmatprep.subr.mxu0 0.0
    %483 = vmatpush1.msra.mxu0 %v477
    %484 = vmatprep.subr.mxu0 0.0
    %485 = vmatpush1.msra.mxu0 %v476
    %486 = vmatprep.subr.mxu0 0.0
    %487 = vmatpush1.msra.mxu0 %v475
    %488 = vmatprep.subr.mxu0 0.0
    %489 = vmatpush1.msra.mxu0 %v474
    %490 = vmatprep.subr.mxu0 0.0
    %491 = vmatpush1.msra.mxu0 %v473
    %492 = vmatprep.subr.mxu0 0.0
    %493 = vmatpush1.msra.mxu0 %v472
    %494 = vmatprep.subr.mxu0 0.0
    %495 = vmatpush1.msra.mxu0 %v471
    %496 = vmatprep.subr.mxu0 0.0
    %497 = vmatpush1.msra.mxu0 %v470
    %498 = vmatprep.subr.mxu0 0.0
    %499 = vmatpush1.msra.mxu0 %v469
    %500 = vmatprep.subr.mxu0 0.0
    %501 = vmatpush1.msra.mxu0 %v468
    %502 = vmatprep.subr.mxu0 0.0
    %503 = vmatpush1.msra.mxu0 %v467
    %504 = vmatprep.subr.mxu0 0.0
    %505 = vmatpush1.msra.mxu0 %v466
    %506 = vmatprep.subr.mxu0 0.0
    %507 = vmatpush1.msra.mxu0 %v465
    %508 = vmatprep.subr.mxu0 0.0
    %509 = vmatpush1.msra.mxu0 %v464
    %510 = vmatprep.subr.mxu0 0.0
    %511 = vmatpush1.msra.mxu0 %v463
    %512 = vmatprep.subr.mxu0 0.0
    %513 = vmatpush1.msra.mxu0 %v462
    %514 = vmatprep.subr.mxu0 0.0
    %515 = vmatpush2.msra.mxu0 0.0
    %516 = vmatprep.subr.mxu0 0.0
    %517 = vmatpush2.msra.mxu0 0.0
    %518 = vmatprep.subr.mxu0 0.0
    %519 = vmatpush2.msra.mxu0 0.0
    %520 = vmatprep.subr.mxu0 0.0
    %521 = vmatpush2.msra.mxu0 0.0
    %522 = vmatprep.subr.mxu0 0.0
    %523 = vmatpush2.msra.mxu0 0.0
    %524 = vmatprep.subr.mxu0 0.0
    %525 = vmatpush2.msra.mxu0 0.0
    %526 = vmatprep.subr.mxu0 0.0
    %527 = vmatpush2.msra.mxu0 0.0
    %528 = vmatprep.subr.mxu0 0.0
    %529 = vmatpush2.msra.mxu0 0.0
    %530 = vmatprep.subr.mxu0 0.0
    %531 = vmatpush2.msra.mxu0 0.0
    %532 = vmatprep.subr.mxu0 0.0
    %533 = vmatpush2.msra.mxu0 0.0
    %534 = vmatprep.subr.mxu0 0.0
    %535 = vmatpush2.msra.mxu0 0.0
    %536 = vmatprep.subr.mxu0 0.0
    %537 = vmatpush2.msra.mxu0 0.0
    %538 = vmatprep.subr.mxu0 0.0
    %539 = vmatpush2.msra.mxu0 0.0
    %540 = vmatprep.subr.mxu0 0.0
    %541 = vmatpush2.msra.mxu0 0.0
    %542 = vmatprep.subr.mxu0 0.0
    %543 = vmatpush2.msra.mxu0 0.0
    %544 = vmatprep.subr.mxu0 0.0
    %545 = vmatpush2.msra.mxu0 0.0
    %546 = vmatprep.mubr.f32.mxu0 0.0
    %547 = vmatmul.mubr.f32.gmra.mxu0 %v461
    %v548 = vpop.f32.mrf.mxu0
    %v549 = vadd.f32 %v481, %v548
    %v550 = vpop.f32.mrf.mxu0
    %551 = vdwg.mxu0
    %552 = vst.msk [vmem:[#allocation2] sm:$0xff] %vm43, %v549
    // Predicated region
    $region34: #{tpu_custom_call.1} parent=1 // pred_check
      _
    $region35: #{tpu_custom_call.1} parent=1 // pred_check_branch
      %554 = sbr.rel (0) target = $region37
    $region36: #{tpu_custom_call.1} parent=1 // pred_region
      %s556 = ssub.s32 128, 128
      %557 = vsyncadd [#allocation3], %s556
      %s559 = sshll.u32 [#allocation2], 4
      %s560 = int_to_ptr.vmem [resolvable:$true] %s559
      %562 = dma.vmem_to_hbm [thread:$0]  %s560, 128, %s8, [#allocation3]
    $region37: #{tpu_custom_call.1} parent=1 // pred_fallthru
      _
    // Predicated region
    $region38: #{tpu_custom_call.1} parent=1 // pred_check
      _
    $region39: #{tpu_custom_call.1} parent=1 // pred_check_branch
      %564 = sbr.rel (0) target = $region41
    $region40: #{tpu_custom_call.1} parent=1 // pred_region
      %s566 = ssub.s32 128, 128
      %567 = vsyncadd [#allocation5], %s566
      %s569 = sshll.u32 [#allocation4], 4
      %s570 = int_to_ptr.vmem [resolvable:$true] %s569
      %572 = dma.vmem_to_hbm [thread:$0]  %s570, 128, %s9, [#allocation5]
    $region41: #{tpu_custom_call.1} parent=1 // pred_fallthru
      _
    // Predicated region
    $region42: #{tpu_custom_call.1} parent=1 // pred_check
      _
    $region43: #{tpu_custom_call.1} parent=1 // pred_check_branch
      %574 = sbr.rel (0) target = $region45
    $region44: #{tpu_custom_call.1} parent=1 // pred_region
      %575 = dma.done [#allocation3], 128
    $region45: #{tpu_custom_call.1} parent=1 // pred_fallthru
      _
    // Predicated region
    $region46: #{tpu_custom_call.1} parent=1 // pred_check
      _
    $region47: #{tpu_custom_call.1} parent=1 // pred_check_branch
      %577 = sbr.rel (0) target = $region49
    $region48: #{tpu_custom_call.1} parent=1 // pred_region
      %578 = dma.done [#allocation5], 128
    $region49: #{tpu_custom_call.1} parent=1 // pred_fallthru
      _
    %579 = vsyncpa [#allocation3], 1
    %580 = vsyncpa [#allocation5], 1

</llo_original>
